<compile_context>
chip_gen: v7x
topology: tpu7x:2x2x1
jax: 0.10.0
libtpu: 0.0.40
codegen_flags: <defaults>
</compile_context>

<pallas_src>
import functools

import jax
import jax.numpy as jnp
from jax.experimental import pallas as pl
from jax.experimental.pallas import tpu as pltpu

LANE = 128  # pad node + feature dims to multiples of 128 -> lane-dense vregs


def _round_up(n, m):
    return ((n + m - 1) // m) * m


# ----------------------------- Pallas kernel --------------------------------
def gcn_fused_kernel(a_ref, x_ref, *rest, num_layers, layer_dims_pad):
    """Fused L-layer GCN forward.

    rest = (w_0, b_0, w_1, b_1, ..., w_{L-1}, b_{L-1}, o_ref).
    A_hat / x / W are bf16; both dots accumulate in f32 on the MXU.  The
    hidden-layer epilogue (bias + ReLU) runs in the bias dtype (bf16 on
    v6e/v7x, f32 on v5e); the final layer's bias add stays f32 so the stored
    logits keep f32 accuracy.  The hidden activation never leaves VMEM.
    """
    o_ref = rest[-1]
    wb_refs = rest[:-1]

    a = a_ref[...]        # bf16 (N_pad, N_pad) -- loaded once, reused by all layers
    h = x_ref[...]        # bf16 (N_pad, F_in_pad)

    for l in range(num_layers):
        w_ref = wb_refs[2 * l]
        b_ref = wb_refs[2 * l + 1]
        f_in_p, f_out_p = layer_dims_pad[l]

        # Matmul-order heuristic on the PADDED dims (what the MXU executes):
        #   F_in_pad <= F_out_pad : (A @ H) @ W  -> N^2 term uses the smaller dim
        #   F_in_pad  > F_out_pad : A @ (H @ W)
        if f_in_p <= f_out_p:
            ah = jnp.dot(a, h, preferred_element_type=jnp.float32)
            out = jnp.dot(ah.astype(jnp.bfloat16), w_ref[...],
                          preferred_element_type=jnp.float32)
        else:
            hw = jnp.dot(h, w_ref[...], preferred_element_type=jnp.float32)
            out = jnp.dot(a, hw.astype(jnp.bfloat16),
                          preferred_element_type=jnp.float32)

        if l < num_layers - 1:
            # bias + ReLU in the bias dtype (bf16 epilogue on v6e/v7x, f32 on v5e)
            act = out.astype(b_ref.dtype) + b_ref[...]
            act = jnp.maximum(act, 0.0)
            # TODO(synk): training-mode dropout (pltpu.prng_random_bits mask)
            # not implemented; eval mode -> identity.
            h = act.astype(jnp.bfloat16)            # stays resident in VMEM
        else:
            o_ref[...] = (out + b_ref[...]).astype(o_ref.dtype)  # lane-dense store


# ------------------------------- wrapper -------------------------------------
def _epilogue_dtype():
    """bf16 bias/ReLU epilogue only where the VPU has a bf16 path (v6e/v7x)."""
    try:
        kind = jax.devices()[0].device_kind.lower()
    except Exception:
        return jnp.float32
    if ("v6" in kind) or ("v7" in kind) or ("tpu7" in kind):
        return jnp.bfloat16
    return jnp.float32          # v5e and older: no bf16 VALU -> keep f32


def _vmem_limit_bytes(n_pad, f_in_pad, layer_dims_pad):
    """Scoped-VMEM budget: above the 16/32 MiB defaults, below v7x's 64 MiB."""
    need = 2 * n_pad * n_pad + 2 * n_pad * f_in_pad      # A, x (bf16)
    max_f = f_in_pad
    for fi, fo in layer_dims_pad:
        need += 2 * fi * fo + 4 * fo                     # W (bf16) + bias
        max_f = max(max_f, fo)
    need += 4 * n_pad * layer_dims_pad[-1][1]            # output (f32)
    need += 8 * 4 * n_pad * max_f                        # f32 accumulators / temps
    return int(min(max(2 * need, 16 * 1024 * 1024), 60 * 1024 * 1024))


def make_gcn_forward(params, a_hat):
    """Pre-pad / pre-cast all static operands ONCE; return a jitted forward(x).

    All per-call pad/cast XLA ops (the dominant cost at small N) are hoisted
    out of the forward path; the only per-call glue is padding x, which fuses
    into the jitted graph.
    """
    n = a_hat.shape[0]
    num_layers = len(params)
    f_in_true = params[0][0].shape[0]
    f_out_true = params[-1][0].shape[1]

    n_pad = _round_up(n, LANE)                 # lane-dense node axis for A_hat
    f_in_pad = _round_up(f_in_true, LANE)
    out_pad = _round_up(f_out_true, LANE)
    eps_dtype = _epilogue_dtype()

    # A_hat: pad both node axes (zero rows/cols are exact for this computation).
    a_p = jnp.pad(a_hat, ((0, n_pad - n), (0, n_pad - n))).astype(jnp.bfloat16)

    flat_wb = []
    layer_dims_pad = []
    for l, (w, b) in enumerate(params):
        wi = _round_up(w.shape[0], LANE)
        wo = _round_up(w.shape[1], LANE)
        w_p = jnp.pad(w, ((0, wi - w.shape[0]), (0, wo - w.shape[1])))
        b_p = jnp.pad(b, ((0, 0), (0, wo - b.shape[1])))
        b_dtype = eps_dtype if l < num_layers - 1 else jnp.float32
        flat_wb += [w_p.astype(jnp.bfloat16), b_p.astype(b_dtype)]
        layer_dims_pad.append((wi, wo))
    layer_dims_pad = tuple(layer_dims_pad)
    flat_wb = tuple(flat_wb)

    kernel = functools.partial(gcn_fused_kernel, num_layers=num_layers,
                               layer_dims_pad=layer_dims_pad)

    vmem_spec = pl.BlockSpec(memory_space=pltpu.MemorySpace.VMEM)
    call = pl.pallas_call(
        kernel,
        out_shape=jax.ShapeDtypeStruct((n_pad, out_pad), jnp.float32),
        in_specs=[vmem_spec] * (2 + 2 * num_layers),
        out_specs=vmem_spec,
        compiler_params=pltpu.CompilerParams(
            vmem_limit_bytes=_vmem_limit_bytes(n_pad, f_in_pad, layer_dims_pad)),
    )
    # TODO(synk): for N beyond what VMEM holds, add a grid over A_hat's row axis
    # (dimension_semantics=("parallel", ...) for v7x's 2 TensorCores; 256-aligned
    # tiles on v6e/v7x, 128 on v5e) while keeping the full hidden activation as
    # un-tiled VMEM scratch (layer 2 needs every node's hidden row).
    # TODO(synk): for large sparse graphs, replace the dense O(N^2) aggregation
    # with a scalar-prefetch neighbor gather (PrefetchScalarGridSpec / DMA).

    @jax.jit
    def forward(x):
        x_p = jnp.pad(x, ((0, n_pad - x.shape[0]), (0, f_in_pad - x.shape[1])))
        out = call(a_p, x_p.astype(jnp.bfloat16), *flat_wb)
        return out[:n, :f_out_true]            # drop node / lane padding

    return forward


# ------------------------------- glue (JAX) ----------------------------------
def normalized_adjacency(edge_index, num_nodes):
    """A_hat = D^{-1/2} (A + I) D^{-1/2}, messages flow src -> dst."""
    src, dst = edge_index[0], edge_index[1]
    a = jnp.zeros((num_nodes, num_nodes), jnp.float32)
    a = a.at[dst, src].add(1.0)
    a = a + jnp.eye(num_nodes, dtype=jnp.float32)
    deg = a.sum(axis=1)
    d_inv_sqrt = jnp.where(deg > 0.0, 1.0 / jnp.sqrt(deg), 0.0)
    return d_inv_sqrt[:, None] * a * d_inv_sqrt[None, :]


def init_gcn_params(key, input_dim, hidden_dim, output_dim, num_layers=2):
    dims = [input_dim] + [hidden_dim] * (num_layers - 1) + [output_dim]
    params = []
    for i in range(num_layers):
        key, wk = jax.random.split(key)
        fan_in, fan_out = dims[i], dims[i + 1]
        limit = jnp.sqrt(6.0 / (fan_in + fan_out))  # glorot-uniform, deterministic
        w = jax.random.uniform(wk, (fan_in, fan_out), jnp.float32, -limit, limit)
        b = jnp.zeros((1, fan_out), jnp.float32)
        params.append((w, b))
    return params


def gcn_reference(params, x, a_hat):
    """Pure-JAX f32 reference (eval mode) for a loose numerical check."""
    h = x
    for l, (w, b) in enumerate(params):
        h = a_hat @ h @ w + b
        if l < len(params) - 1:
            h = jnp.maximum(h, 0.0)
    return h


# --------------------------------- main --------------------------------------
if __name__ == "__main__":
    key = jax.random.PRNGKey(0)

    num_nodes = 64
    input_dim, hidden_dim, output_dim = 16, 32, 8

    # deterministic node features
    key, xk = jax.random.split(key)
    x = jax.random.normal(xk, (num_nodes, input_dim), jnp.float32)

    # deterministic ring graph, edges in both directions: edge_index (2, 2N)
    idx = jnp.arange(num_nodes, dtype=jnp.int32)
    nxt = (idx + 1) % num_nodes
    src = jnp.concatenate([idx, nxt])
    dst = jnp.concatenate([nxt, idx])
    edge_index = jnp.stack([src, dst], axis=0)

    a_hat = normalized_adjacency(edge_index, num_nodes)

    key, pk = jax.random.split(key)
    params = init_gcn_params(pk, input_dim, hidden_dim, output_dim, num_layers=2)

    forward = make_gcn_forward(params, a_hat)   # pad/cast hoisted here, once
    out = jax.block_until_ready(forward(x))

    assert out.shape == (num_nodes, output_dim)
    assert bool(jnp.all(jnp.isfinite(out)))

    # loose check vs f32 reference (bf16 MXU inputs -> ~1e-2 level deviation)
    ref = gcn_reference(params, x, a_hat)
    max_err = float(jnp.max(jnp.abs(out - ref)))
    assert max_err < 0.1, f"max abs error vs f32 reference too large: {max_err}"

    print("KERNEL_OK")
</pallas_src>

<mosaic_0001>
module attributes {stable_mosaic.version = 11 : i64} {
  func.func @gcn_fused_kernel(%arg0: memref<128x128xbf16, #tpu.memory_space<vmem>>, %arg1: memref<128x128xbf16, #tpu.memory_space<vmem>>, %arg2: memref<128x128xbf16, #tpu.memory_space<vmem>>, %arg3: memref<1x128xf32, #tpu.memory_space<vmem>>, %arg4: memref<128x128xbf16, #tpu.memory_space<vmem>>, %arg5: memref<1x128xf32, #tpu.memory_space<vmem>>, %arg6: memref<128x128xf32, #tpu.memory_space<vmem>>) attributes {dimension_semantics = [], scalar_prefetch = 0 : i64, scratch_operands = 0 : i64, tpu.core_type = #tpu.core_type<tc>} {
    %c0 = arith.constant 0 : index
    %c0_0 = arith.constant 0 : index
    %0 = vector.load %arg0[%c0, %c0_0] : memref<128x128xbf16, #tpu.memory_space<vmem>>, vector<128x128xbf16>
    %c0_1 = arith.constant 0 : index
    %c0_2 = arith.constant 0 : index
    %1 = vector.load %arg1[%c0_1, %c0_2] : memref<128x128xbf16, #tpu.memory_space<vmem>>, vector<128x128xbf16>
    %cst = arith.constant dense<0.000000e+00> : vector<128x128xf32>
    %2 = tpu.matmul %0, %1, %cst {dimension_numbers = #tpu.dot_dimension_numbers<[1], [0], [0], [1], [0, 0, 1, 1], [], []>} : vector<128x128xbf16>, vector<128x128xbf16>, vector<128x128xf32> -> vector<128x128xf32>
    %3 = arith.truncf %2 : vector<128x128xf32> to vector<128x128xbf16>
    %c0_3 = arith.constant 0 : index
    %c0_4 = arith.constant 0 : index
    %4 = vector.load %arg2[%c0_3, %c0_4] : memref<128x128xbf16, #tpu.memory_space<vmem>>, vector<128x128xbf16>
    %cst_5 = arith.constant dense<0.000000e+00> : vector<128x128xf32>
    %5 = tpu.matmul %3, %4, %cst_5 {dimension_numbers = #tpu.dot_dimension_numbers<[1], [0], [0], [1], [0, 0, 1, 1], [], []>} : vector<128x128xbf16>, vector<128x128xbf16>, vector<128x128xf32> -> vector<128x128xf32>
    %c0_6 = arith.constant 0 : index
    %c0_7 = arith.constant 0 : index
    %6 = vector.load %arg3[%c0_6, %c0_7] : memref<1x128xf32, #tpu.memory_space<vmem>>, vector<1x128xf32>
    %7 = vector.broadcast %6 : vector<1x128xf32> to vector<128x128xf32>
    %8 = arith.addf %5, %7 : vector<128x128xf32>
    %cst_8 = arith.constant 0.000000e+00 : f32
    %9 = vector.broadcast %cst_8 : f32 to vector<128x128xf32>
    %10 = arith.maximumf %8, %9 : vector<128x128xf32>
    %11 = arith.truncf %10 : vector<128x128xf32> to vector<128x128xbf16>
    %cst_9 = arith.constant dense<0.000000e+00> : vector<128x128xf32>
    %12 = tpu.matmul %0, %11, %cst_9 {dimension_numbers = #tpu.dot_dimension_numbers<[1], [0], [0], [1], [0, 0, 1, 1], [], []>} : vector<128x128xbf16>, vector<128x128xbf16>, vector<128x128xf32> -> vector<128x128xf32>
    %13 = arith.truncf %12 : vector<128x128xf32> to vector<128x128xbf16>
    %c0_10 = arith.constant 0 : index
    %c0_11 = arith.constant 0 : index
    %14 = vector.load %arg4[%c0_10, %c0_11] : memref<128x128xbf16, #tpu.memory_space<vmem>>, vector<128x128xbf16>
    %cst_12 = arith.constant dense<0.000000e+00> : vector<128x128xf32>
    %15 = tpu.matmul %13, %14, %cst_12 {dimension_numbers = #tpu.dot_dimension_numbers<[1], [0], [0], [1], [0, 0, 1, 1], [], []>} : vector<128x128xbf16>, vector<128x128xbf16>, vector<128x128xf32> -> vector<128x128xf32>
    %c0_13 = arith.constant 0 : index
    %c0_14 = arith.constant 0 : index
    %16 = vector.load %arg5[%c0_13, %c0_14] : memref<1x128xf32, #tpu.memory_space<vmem>>, vector<1x128xf32>
    %17 = vector.broadcast %16 : vector<1x128xf32> to vector<128x128xf32>
    %18 = arith.addf %15, %17 : vector<128x128xf32>
    %c0_15 = arith.constant 0 : index
    %c0_16 = arith.constant 0 : index
    %19 = vector.load %arg6[%c0_15, %c0_16] : memref<128x128xf32, #tpu.memory_space<vmem>>, vector<128x128xf32>
    tpu.vector_store %arg6[%c0_15, %c0_16], %18 {strides = array<i32>} : memref<128x128xf32, #tpu.memory_space<vmem>>, vector<128x128xf32>,
    return
  }
}

</mosaic_0001>

<llo_original>
// kernel: forward.1
$region0: #{forward.1}
  #allocation0 [shape = 'u32[]', space=smem, size = 0x4, offset = 0x4, fixed_abs, tag = 'smem constant byte address 0x4 - core index']
  #allocation1 [shape = 'u32[144,128]{1,0:T(1,128)}', space=vmem, size = 0x12000, scoped, tag = 'internal scratch']
  %s0 = inlined_call_operand.hbm [shape: bf16[128,128], index: 0, kind: input, shape index: {}]
  %s1 = inlined_call_operand.vmem [shape: bf16[128,128], index: 1, kind: input, shape index: {}]
  %s2 = inlined_call_operand.vmem [shape: bf16[128,128], index: 2, kind: input, shape index: {}]
  %s3 = inlined_call_operand.vmem [shape: f32[1,128], index: 3, kind: input, shape index: {}, may-alias: {3,5}]
  %s4 = inlined_call_operand.vmem [shape: bf16[128,128], index: 4, kind: input, shape index: {}]
  %s5 = inlined_call_operand.vmem [shape: f32[1,128], index: 5, kind: input, shape index: {}, may-alias: {3,5}]
  %s6 = inlined_call_operand.vmem [shape: f32[128,128], index: 6, kind: output, shape index: {}]
  %s7 = sld [smem:[#allocation0]]
  $region38: #{forward.1} parent=0
    _
  %s9 = ssub.s32 1, %s7
  %s10 = scalar_select 0, %s9, %s7
  $region1: #{forward.1} parent=0
    #allocation2 [shape = 'u8[32768]{0}', space=vmem, size = 0x8000, scoped, tag = 'input window, operand 0, single buffered']
    #allocation3 [shape = 's32[1]{0}', space=sflag, size = 0x4, scoped, tag = 'scoped memory for forward.1']
    %11 = vsyncpa [#allocation3], 0
    // Predicated region
    $region2: #{forward.1} parent=1 // pred_check
      _
    $region3: #{forward.1} parent=1 // pred_check_branch
      %13 = sbr.rel (0) target = $region5
    $region4: #{forward.1} parent=1 // pred_region
      %s15 = ssub.s32 1024, 1024
      %16 = vsyncadd [#allocation3], %s15
      %s17 = sshll.u32 [#allocation2], 4
      %s18 = int_to_ptr.vmem [resolvable:$true] %s17
      %23 = dma.hbm_to_vmem [thread:$0]  %s0, 1024, %s18, [#allocation3], 64, 64, 4
    $region5: #{forward.1} parent=1 // pred_fallthru
      _
    // Predicated region
    $region6: #{forward.1} parent=1 // pred_check
      _
    $region7: #{forward.1} parent=1 // pred_check_branch
      %25 = sbr.rel (0) target = $region9
    $region8: #{forward.1} parent=1 // pred_region
      _
    $region9: #{forward.1} parent=1 // pred_fallthru
      _
    // Predicated region
    $region10: #{forward.1} parent=1 // pred_check
      _
    $region11: #{forward.1} parent=1 // pred_check_branch
      %27 = sbr.rel (0) target = $region13
    $region12: #{forward.1} parent=1 // pred_region
      _
    $region13: #{forward.1} parent=1 // pred_fallthru
      _
    // Predicated region
    $region14: #{forward.1} parent=1 // pred_check
      _
    $region15: #{forward.1} parent=1 // pred_check_branch
      %29 = sbr.rel (0) target = $region17
    $region16: #{forward.1} parent=1 // pred_region
      _
    $region17: #{forward.1} parent=1 // pred_fallthru
      _
    // Predicated region
    $region18: #{forward.1} parent=1 // pred_check
      _
    $region19: #{forward.1} parent=1 // pred_check_branch
      %31 = sbr.rel (0) target = $region21
    $region20: #{forward.1} parent=1 // pred_region
      _
    $region21: #{forward.1} parent=1 // pred_fallthru
      _
    // Predicated region
    $region22: #{forward.1} parent=1 // pred_check
      _
    $region23: #{forward.1} parent=1 // pred_check_branch
      %33 = sbr.rel (0) target = $region25
    $region24: #{forward.1} parent=1 // pred_region
      _
    $region25: #{forward.1} parent=1 // pred_fallthru
      _
    // Predicated region
    $region26: #{forward.1} parent=1 // pred_check
      _
    $region27: #{forward.1} parent=1 // pred_check_branch
      %35 = sbr.rel (0) target = $region29
    $region28: #{forward.1} parent=1 // pred_region
      %36 = dma.done [#allocation3], 1024
    $region29: #{forward.1} parent=1 // pred_fallthru
      _
    %v38 = vld [vmem:[#allocation2] sm:$0xf]
    %v39 = vld [vmem:[#allocation2 + $0x4] sm:$0xf]
    %v40 = vld [vmem:[#allocation2 + $0x8] sm:$0xf]
    %v41 = vld [vmem:[#allocation2 + $0xc] sm:$0xf]
    %v42 = vld [vmem:[#allocation2 + $0x10] sm:$0xf]
    %v43 = vld [vmem:[#allocation2 + $0x14] sm:$0xf]
    %v44 = vld [vmem:[#allocation2 + $0x18] sm:$0xf]
    %v45 = vld [vmem:[#allocation2 + $0x1c] sm:$0xf]
    %v46 = vld [vmem:[#allocation2 + $0x20] sm:$0xf]
    %v47 = vld [vmem:[#allocation2 + $0x24] sm:$0xf]
    %v48 = vld [vmem:[#allocation2 + $0x28] sm:$0xf]
    %v49 = vld [vmem:[#allocation2 + $0x2c] sm:$0xf]
    %v50 = vld [vmem:[#allocation2 + $0x30] sm:$0xf]
    %v51 = vld [vmem:[#allocation2 + $0x34] sm:$0xf]
    %v52 = vld [vmem:[#allocation2 + $0x38] sm:$0xf]
    %v53 = vld [vmem:[#allocation2 + $0x3c] sm:$0xf]
    %v54 = vld [vmem:[%s1] sm:$0xf]
    %v55 = vld [vmem:[%s1 + $0x4] sm:$0xf]
    %v56 = vld [vmem:[%s1 + $0x8] sm:$0xf]
    %v57 = vld [vmem:[%s1 + $0xc] sm:$0xf]
    %v58 = vld [vmem:[%s1 + $0x10] sm:$0xf]
    %v59 = vld [vmem:[%s1 + $0x14] sm:$0xf]
    %v60 = vld [vmem:[%s1 + $0x18] sm:$0xf]
    %v61 = vld [vmem:[%s1 + $0x1c] sm:$0xf]
    %v62 = vld [vmem:[%s1 + $0x20] sm:$0xf]
    %v63 = vld [vmem:[%s1 + $0x24] sm:$0xf]
    %v64 = vld [vmem:[%s1 + $0x28] sm:$0xf]
    %v65 = vld [vmem:[%s1 + $0x2c] sm:$0xf]
    %v66 = vld [vmem:[%s1 + $0x30] sm:$0xf]
    %v67 = vld [vmem:[%s1 + $0x34] sm:$0xf]
    %v68 = vld [vmem:[%s1 + $0x38] sm:$0xf]
    %v69 = vld [vmem:[%s1 + $0x3c] sm:$0xf]
    %v86 = vunpack.c.l.b16 %v38
    %v87 = vunpack.c.l.b16 %v39
    %v88 = vunpack.c.l.b16 %v40
    %v89 = vunpack.c.l.b16 %v41
    %v90 = vunpack.c.l.b16 %v42
    %v91 = vunpack.c.l.b16 %v43
    %v92 = vunpack.c.l.b16 %v44
    %v93 = vunpack.c.l.b16 %v45
    %v94 = vunpack.c.l.b16 %v46
    %v95 = vunpack.c.l.b16 %v47
    %v96 = vunpack.c.l.b16 %v48
    %v97 = vunpack.c.l.b16 %v49
    %v98 = vunpack.c.l.b16 %v50
    %v99 = vunpack.c.l.b16 %v51
    %v100 = vunpack.c.l.b16 %v52
    %v101 = vunpack.c.l.b16 %v53
    %v102 = vpack.c.b16 %v87, %v86
    %v103 = vpack.c.b16 %v89, %v88
    %v104 = vpack.c.b16 %v91, %v90
    %v105 = vpack.c.b16 %v93, %v92
    %v106 = vpack.c.b16 %v95, %v94
    %v107 = vpack.c.b16 %v97, %v96
    %v108 = vpack.c.b16 %v99, %v98
    %v109 = vpack.c.b16 %v101, %v100
    %v134 = vunpack.c.l.b16 %v54
    %v135 = vunpack.c.l.b16 %v55
    %v136 = vunpack.c.l.b16 %v56
    %v137 = vunpack.c.l.b16 %v57
    %v138 = vunpack.c.l.b16 %v58
    %v139 = vunpack.c.l.b16 %v59
    %v140 = vunpack.c.l.b16 %v60
    %v141 = vunpack.c.l.b16 %v61
    %v142 = vunpack.c.l.b16 %v62
    %v143 = vunpack.c.l.b16 %v63
    %v144 = vunpack.c.l.b16 %v64
    %v145 = vunpack.c.l.b16 %v65
    %v146 = vunpack.c.l.b16 %v66
    %v147 = vunpack.c.l.b16 %v67
    %v148 = vunpack.c.l.b16 %v68
    %v149 = vunpack.c.l.b16 %v69
    %v150 = vpack.c.b16 %v135, %v134
    %v151 = vpack.c.b16 %v137, %v136
    %v152 = vpack.c.b16 %v139, %v138
    %v153 = vpack.c.b16 %v141, %v140
    %v154 = vpack.c.b16 %v143, %v142
    %v155 = vpack.c.b16 %v145, %v144
    %v156 = vpack.c.b16 %v147, %v146
    %v157 = vpack.c.b16 %v149, %v148
    %166 = vmatprep.subr.bf16.mxu0 0
    %167 = vmatpush1.bf16.msra.mxu0 %v150
    %168 = vmatprep.subr.bf16.mxu0 0
    %169 = vmatpush1.bf16.msra.mxu0 %v151
    %170 = vmatprep.subr.bf16.mxu0 0
    %171 = vmatpush1.bf16.msra.mxu0 %v152
    %172 = vmatprep.subr.bf16.mxu0 0
    %173 = vmatpush1.bf16.msra.mxu0 %v153
    %174 = vmatprep.subr.bf16.mxu0 0
    %175 = vmatpush1.bf16.msra.mxu0 %v154
    %176 = vmatprep.subr.bf16.mxu0 0
    %177 = vmatpush1.bf16.msra.mxu0 %v155
    %178 = vmatprep.subr.bf16.mxu0 0
    %179 = vmatpush1.bf16.msra.mxu0 %v156
    %180 = vmatprep.subr.bf16.mxu0 0
    %181 = vmatpush1.bf16.msra.mxu0 %v157
    %182 = vmatprep.subr.bf16.mxu0 0
    %183 = vmatpush1.bf16.msra.mxu0 0
    %184 = vmatprep.subr.bf16.mxu0 0
    %185 = vmatpush1.bf16.msra.mxu0 0
    %186 = vmatprep.subr.bf16.mxu0 0
    %187 = vmatpush1.bf16.msra.mxu0 0
    %188 = vmatprep.subr.bf16.mxu0 0
    %189 = vmatpush1.bf16.msra.mxu0 0
    %190 = vmatprep.subr.bf16.mxu0 0
    %191 = vmatpush1.bf16.msra.mxu0 0
    %192 = vmatprep.subr.bf16.mxu0 0
    %193 = vmatpush1.bf16.msra.mxu0 0
    %194 = vmatprep.subr.bf16.mxu0 0
    %195 = vmatpush1.bf16.msra.mxu0 0
    %196 = vmatprep.subr.bf16.mxu0 0
    %197 = vmatpush1.bf16.msra.mxu0 0
    %198 = vmatprep.mubr.bf16.mxu0 0
    %199 = vmatmul.mubr.bf16.gmra.mrb[0].mxu0 %v102
    %v200 = vpop.f32.mrb[0].mxu0
    %v201 = vadd.f32 0.0, %v200
    %v202 = vpop.f32.mrb[0].mxu0
    %v203 = vpop.f32.mrb[0].mxu0
    %v204 = vadd.f32 0.0, %v203
    %v205 = vpop.f32.mrb[0].mxu0
    %206 = vmatprep.mubr.bf16.mxu0 0
    %207 = vmatmul.mubr.bf16.gmra.mrb[0].mxu0 %v103
    %v208 = vpop.f32.mrb[0].mxu0
    %v209 = vadd.f32 0.0, %v208
    %v210 = vpop.f32.mrb[0].mxu0
    %v211 = vpop.f32.mrb[0].mxu0
    %v212 = vadd.f32 0.0, %v211
    %v213 = vpop.f32.mrb[0].mxu0
    %214 = vmatprep.mubr.bf16.mxu0 0
    %215 = vmatmul.mubr.bf16.gmra.mrb[0].mxu0 %v104
    %v216 = vpop.f32.mrb[0].mxu0
    %v217 = vadd.f32 0.0, %v216
    %v218 = vpop.f32.mrb[0].mxu0
    %v219 = vpop.f32.mrb[0].mxu0
    %v220 = vadd.f32 0.0, %v219
    %v221 = vpop.f32.mrb[0].mxu0
    %222 = vmatprep.mubr.bf16.mxu0 0
    %223 = vmatmul.mubr.bf16.gmra.mrb[0].mxu0 %v105
    %v224 = vpop.f32.mrb[0].mxu0
    %v225 = vadd.f32 0.0, %v224
    %v226 = vpop.f32.mrb[0].mxu0
    %v227 = vpop.f32.mrb[0].mxu0
    %v228 = vadd.f32 0.0, %v227
    %v229 = vpop.f32.mrb[0].mxu0
    %230 = vmatprep.mubr.bf16.mxu0 0
    %231 = vmatmul.mubr.bf16.gmra.mrb[0].mxu0 %v106
    %v232 = vpop.f32.mrb[0].mxu0
    %v233 = vadd.f32 0.0, %v232
    %v234 = vpop.f32.mrb[0].mxu0
    %v235 = vpop.f32.mrb[0].mxu0
    %v236 = vadd.f32 0.0, %v235
    %v237 = vpop.f32.mrb[0].mxu0
    %238 = vmatprep.mubr.bf16.mxu0 0
    %239 = vmatmul.mubr.bf16.gmra.mrb[0].mxu0 %v107
    %v240 = vpop.f32.mrb[0].mxu0
    %v241 = vadd.f32 0.0, %v240
    %v242 = vpop.f32.mrb[0].mxu0
    %v243 = vpop.f32.mrb[0].mxu0
    %v244 = vadd.f32 0.0, %v243
    %v245 = vpop.f32.mrb[0].mxu0
    %246 = vmatprep.mubr.bf16.mxu0 0
    %247 = vmatmul.mubr.bf16.gmra.mrb[0].mxu0 %v108
    %v248 = vpop.f32.mrb[0].mxu0
    %v249 = vadd.f32 0.0, %v248
    %v250 = vpop.f32.mrb[0].mxu0
    %v251 = vpop.f32.mrb[0].mxu0
    %v252 = vadd.f32 0.0, %v251
    %v253 = vpop.f32.mrb[0].mxu0
    %254 = vmatprep.mubr.bf16.mxu0 0
    %255 = vmatmul.mubr.bf16.gmra.mrb[0].mxu0 %v109
    %v256 = vpop.f32.mrb[0].mxu0
    %v257 = vadd.f32 0.0, %v256
    %v258 = vpop.f32.mrb[0].mxu0
    %v259 = vpop.f32.mrb[0].mxu0
    %v260 = vadd.f32 0.0, %v259
    %v261 = vpop.f32.mrb[0].mxu0
    %262 = vdwg.mxu0
    %v263 = vpack.c.bf16 %v204, %v201
    %v264 = vpack.c.bf16 %v212, %v209
    %v265 = vpack.c.bf16 %v220, %v217
    %v266 = vpack.c.bf16 %v228, %v225
    %v267 = vpack.c.bf16 %v236, %v233
    %v268 = vpack.c.bf16 %v244, %v241
    %v269 = vpack.c.bf16 %v252, %v249
    %v270 = vpack.c.bf16 %v260, %v257
    %v271 = vld [vmem:[%s2] sm:$0xf]
    %v272 = vld [vmem:[%s2 + $0x4] sm:$0xf]
    %v273 = vld [vmem:[%s2 + $0x8] sm:$0xf]
    %v274 = vld [vmem:[%s2 + $0xc] sm:$0xf]
    %v275 = vld [vmem:[%s2 + $0x10] sm:$0xf]
    %v276 = vld [vmem:[%s2 + $0x14] sm:$0xf]
    %v277 = vld [vmem:[%s2 + $0x18] sm:$0xf]
    %v278 = vld [vmem:[%s2 + $0x1c] sm:$0xf]
    %v279 = vld [vmem:[%s2 + $0x20] sm:$0xf]
    %v280 = vld [vmem:[%s2 + $0x24] sm:$0xf]
    %v281 = vld [vmem:[%s2 + $0x28] sm:$0xf]
    %v282 = vld [vmem:[%s2 + $0x2c] sm:$0xf]
    %v283 = vld [vmem:[%s2 + $0x30] sm:$0xf]
    %v284 = vld [vmem:[%s2 + $0x34] sm:$0xf]
    %v285 = vld [vmem:[%s2 + $0x38] sm:$0xf]
    %v286 = vld [vmem:[%s2 + $0x3c] sm:$0xf]
    %v287 = vld [vmem:[%s3] sm:$0x1]
    %v289 = vlaneseq
    %v290 = vshrl.u32 %v289, 7
    %v291 = vsub.s32 0, %v290
    %v292 = vrot.slane %v287, %v291
    %v310 = vunpack.c.l.b16 %v271
    %v311 = vunpack.c.l.b16 %v272
    %v312 = vunpack.c.l.b16 %v273
    %v313 = vunpack.c.l.b16 %v274
    %v314 = vunpack.c.l.b16 %v275
    %v315 = vunpack.c.l.b16 %v276
    %v316 = vunpack.c.l.b16 %v277
    %v317 = vunpack.c.l.b16 %v278
    %v318 = vunpack.c.l.b16 %v279
    %v319 = vunpack.c.l.b16 %v280
    %v320 = vunpack.c.l.b16 %v281
    %v321 = vunpack.c.l.b16 %v282
    %v322 = vunpack.c.l.b16 %v283
    %v323 = vunpack.c.l.b16 %v284
    %v324 = vunpack.c.l.b16 %v285
    %v325 = vunpack.c.l.b16 %v286
    %v326 = vpack.c.b16 %v311, %v310
    %v327 = vpack.c.b16 %v313, %v312
    %v328 = vpack.c.b16 %v315, %v314
    %v329 = vpack.c.b16 %v317, %v316
    %v330 = vpack.c.b16 %v319, %v318
    %v331 = vpack.c.b16 %v321, %v320
    %v332 = vpack.c.b16 %v323, %v322
    %v333 = vpack.c.b16 %v325, %v324
    %342 = vmatprep.subr.bf16.mxu0 0
    %343 = vmatpush1.bf16.msra.mxu0 %v326
    %344 = vmatprep.subr.bf16.mxu0 0
    %345 = vmatpush1.bf16.msra.mxu0 %v327
    %346 = vmatprep.subr.bf16.mxu0 0
    %347 = vmatpush1.bf16.msra.mxu0 %v328
    %348 = vmatprep.subr.bf16.mxu0 0
    %349 = vmatpush1.bf16.msra.mxu0 %v329
    %350 = vmatprep.subr.bf16.mxu0 0
    %351 = vmatpush1.bf16.msra.mxu0 %v330
    %352 = vmatprep.subr.bf16.mxu0 0
    %353 = vmatpush1.bf16.msra.mxu0 %v331
    %354 = vmatprep.subr.bf16.mxu0 0
    %355 = vmatpush1.bf16.msra.mxu0 %v332
    %356 = vmatprep.subr.bf16.mxu0 0
    %357 = vmatpush1.bf16.msra.mxu0 %v333
    %358 = vmatprep.subr.bf16.mxu0 0
    %359 = vmatpush1.bf16.msra.mxu0 0
    %360 = vmatprep.subr.bf16.mxu0 0
    %361 = vmatpush1.bf16.msra.mxu0 0
    %362 = vmatprep.subr.bf16.mxu0 0
    %363 = vmatpush1.bf16.msra.mxu0 0
    %364 = vmatprep.subr.bf16.mxu0 0
    %365 = vmatpush1.bf16.msra.mxu0 0
    %366 = vmatprep.subr.bf16.mxu0 0
    %367 = vmatpush1.bf16.msra.mxu0 0
    %368 = vmatprep.subr.bf16.mxu0 0
    %369 = vmatpush1.bf16.msra.mxu0 0
    %370 = vmatprep.subr.bf16.mxu0 0
    %371 = vmatpush1.bf16.msra.mxu0 0
    %372 = vmatprep.subr.bf16.mxu0 0
    %373 = vmatpush1.bf16.msra.mxu0 0
    %374 = vmatprep.mubr.bf16.mxu0 0
    %375 = vmatmul.mubr.bf16.gmra.mrb[0].mxu0 %v263
    %v376 = vpop.f32.mrb[0].mxu0
    %v377 = vadd.f32 %v292, %v376
    %v378 = vpop.f32.mrb[0].mxu0
    %v379 = vpop.f32.mrb[0].mxu0
    %v380 = vadd.f32 %v292, %v379
    %v381 = vpop.f32.mrb[0].mxu0
    %382 = vmatprep.mubr.bf16.mxu0 0
    %383 = vmatmul.mubr.bf16.gmra.mrb[0].mxu0 %v264
    %v384 = vpop.f32.mrb[0].mxu0
    %v385 = vadd.f32 %v292, %v384
    %v386 = vpop.f32.mrb[0].mxu0
    %v387 = vpop.f32.mrb[0].mxu0
    %v388 = vadd.f32 %v292, %v387
    %v389 = vpop.f32.mrb[0].mxu0
    %390 = vmatprep.mubr.bf16.mxu0 0
    %391 = vmatmul.mubr.bf16.gmra.mrb[0].mxu0 %v265
    %v392 = vpop.f32.mrb[0].mxu0
    %v393 = vadd.f32 %v292, %v392
    %v394 = vpop.f32.mrb[0].mxu0
    %v395 = vpop.f32.mrb[0].mxu0
    %v396 = vadd.f32 %v292, %v395
    %v397 = vpop.f32.mrb[0].mxu0
    %398 = vmatprep.mubr.bf16.mxu0 0
    %399 = vmatmul.mubr.bf16.gmra.mrb[0].mxu0 %v266
    %v400 = vpop.f32.mrb[0].mxu0
    %v401 = vadd.f32 %v292, %v400
    %v402 = vpop.f32.mrb[0].mxu0
    %v403 = vpop.f32.mrb[0].mxu0
    %v404 = vadd.f32 %v292, %v403
    %v405 = vpop.f32.mrb[0].mxu0
    %406 = vmatprep.mubr.bf16.mxu0 0
    %407 = vmatmul.mubr.bf16.gmra.mrb[0].mxu0 %v267
    %v408 = vpop.f32.mrb[0].mxu0
    %v409 = vadd.f32 %v292, %v408
    %v410 = vpop.f32.mrb[0].mxu0
    %v411 = vpop.f32.mrb[0].mxu0
    %v412 = vadd.f32 %v292, %v411
    %v413 = vpop.f32.mrb[0].mxu0
    %414 = vmatprep.mubr.bf16.mxu0 0
    %415 = vmatmul.mubr.bf16.gmra.mrb[0].mxu0 %v268
    %v416 = vpop.f32.mrb[0].mxu0
    %v417 = vadd.f32 %v292, %v416
    %v418 = vpop.f32.mrb[0].mxu0
    %v419 = vpop.f32.mrb[0].mxu0
    %v420 = vadd.f32 %v292, %v419
    %v421 = vpop.f32.mrb[0].mxu0
    %422 = vmatprep.mubr.bf16.mxu0 0
    %423 = vmatmul.mubr.bf16.gmra.mrb[0].mxu0 %v269
    %v424 = vpop.f32.mrb[0].mxu0
    %v425 = vadd.f32 %v292, %v424
    %v426 = vpop.f32.mrb[0].mxu0
    %v427 = vpop.f32.mrb[0].mxu0
    %v428 = vadd.f32 %v292, %v427
    %v429 = vpop.f32.mrb[0].mxu0
    %430 = vmatprep.mubr.bf16.mxu0 0
    %431 = vmatmul.mubr.bf16.gmra.mrb[0].mxu0 %v270
    %v432 = vpop.f32.mrb[0].mxu0
    %v433 = vadd.f32 %v292, %v432
    %v434 = vpop.f32.mrb[0].mxu0
    %v435 = vpop.f32.mrb[0].mxu0
    %v436 = vadd.f32 %v292, %v435
    %v437 = vpop.f32.mrb[0].mxu0
    %438 = vdwg.mxu0
    %v439 = vmax.f32 %v377, 0.0
    %v440 = vmax.f32 %v380, 0.0
    %v441 = vmax.f32 %v385, 0.0
    %v442 = vmax.f32 %v388, 0.0
    %v443 = vmax.f32 %v393, 0.0
    %v444 = vmax.f32 %v396, 0.0
    %v445 = vmax.f32 %v401, 0.0
    %v446 = vmax.f32 %v404, 0.0
    %v447 = vmax.f32 %v409, 0.0
    %v448 = vmax.f32 %v412, 0.0
    %v449 = vmax.f32 %v417, 0.0
    %v450 = vmax.f32 %v420, 0.0
    %v451 = vmax.f32 %v425, 0.0
    %v452 = vmax.f32 %v428, 0.0
    %v453 = vmax.f32 %v433, 0.0
    %v454 = vmax.f32 %v436, 0.0
    %v455 = vpack.c.bf16 %v440, %v439
    %v456 = vpack.c.bf16 %v442, %v441
    %v457 = vpack.c.bf16 %v444, %v443
    %v458 = vpack.c.bf16 %v446, %v445
    %v459 = vpack.c.bf16 %v448, %v447
    %v460 = vpack.c.bf16 %v450, %v449
    %v461 = vpack.c.bf16 %v452, %v451
    %v462 = vpack.c.bf16 %v454, %v453
    %463 = vmatprep.subr.bf16.mxu0 0
    %464 = vmatpush1.bf16.msra.mxu0 %v455
    %465 = vmatprep.subr.bf16.mxu0 0
    %466 = vmatpush1.bf16.msra.mxu0 %v456
    %467 = vmatprep.subr.bf16.mxu0 0
    %468 = vmatpush1.bf16.msra.mxu0 %v457
    %469 = vmatprep.subr.bf16.mxu0 0
    %470 = vmatpush1.bf16.msra.mxu0 %v458
    %471 = vmatprep.subr.bf16.mxu0 0
    %472 = vmatpush1.bf16.msra.mxu0 %v459
    %473 = vmatprep.subr.bf16.mxu0 0
    %474 = vmatpush1.bf16.msra.mxu0 %v460
    %475 = vmatprep.subr.bf16.mxu0 0
    %476 = vmatpush1.bf16.msra.mxu0 %v461
    %477 = vmatprep.subr.bf16.mxu0 0
    %478 = vmatpush1.bf16.msra.mxu0 %v462
    %479 = vmatprep.subr.bf16.mxu0 0
    %480 = vmatpush1.bf16.msra.mxu0 0
    %481 = vmatprep.subr.bf16.mxu0 0
    %482 = vmatpush1.bf16.msra.mxu0 0
    %483 = vmatprep.subr.bf16.mxu0 0
    %484 = vmatpush1.bf16.msra.mxu0 0
    %485 = vmatprep.subr.bf16.mxu0 0
    %486 = vmatpush1.bf16.msra.mxu0 0
    %487 = vmatprep.subr.bf16.mxu0 0
    %488 = vmatpush1.bf16.msra.mxu0 0
    %489 = vmatprep.subr.bf16.mxu0 0
    %490 = vmatpush1.bf16.msra.mxu0 0
    %491 = vmatprep.subr.bf16.mxu0 0
    %492 = vmatpush1.bf16.msra.mxu0 0
    %493 = vmatprep.subr.bf16.mxu0 0
    %494 = vmatpush1.bf16.msra.mxu0 0
    %495 = vmatprep.mubr.bf16.mxu0 0
    %496 = vmatmul.mubr.bf16.gmra.mrb[0].mxu0 %v102
    %v497 = vpop.f32.mrb[0].mxu0
    %v498 = vadd.f32 0.0, %v497
    %v499 = vpop.f32.mrb[0].mxu0
    %v500 = vpop.f32.mrb[0].mxu0
    %v501 = vadd.f32 0.0, %v500
    %v502 = vpop.f32.mrb[0].mxu0
    %503 = vmatprep.mubr.bf16.mxu0 0
    %504 = vmatmul.mubr.bf16.gmra.mrb[0].mxu0 %v103
    %v505 = vpop.f32.mrb[0].mxu0
    %v506 = vadd.f32 0.0, %v505
    %v507 = vpop.f32.mrb[0].mxu0
    %v508 = vpop.f32.mrb[0].mxu0
    %v509 = vadd.f32 0.0, %v508
    %v510 = vpop.f32.mrb[0].mxu0
    %511 = vmatprep.mubr.bf16.mxu0 0
    %512 = vmatmul.mubr.bf16.gmra.mrb[0].mxu0 %v104
    %v513 = vpop.f32.mrb[0].mxu0
    %v514 = vadd.f32 0.0, %v513
    %v515 = vpop.f32.mrb[0].mxu0
    %v516 = vpop.f32.mrb[0].mxu0
    %v517 = vadd.f32 0.0, %v516
    %v518 = vpop.f32.mrb[0].mxu0
    %519 = vmatprep.mubr.bf16.mxu0 0
    %520 = vmatmul.mubr.bf16.gmra.mrb[0].mxu0 %v105
    %v521 = vpop.f32.mrb[0].mxu0
    %v522 = vadd.f32 0.0, %v521
    %v523 = vpop.f32.mrb[0].mxu0
    %v524 = vpop.f32.mrb[0].mxu0
    %v525 = vadd.f32 0.0, %v524
    %v526 = vpop.f32.mrb[0].mxu0
    %527 = vmatprep.mubr.bf16.mxu0 0
    %528 = vmatmul.mubr.bf16.gmra.mrb[0].mxu0 %v106
    %v529 = vpop.f32.mrb[0].mxu0
    %v530 = vadd.f32 0.0, %v529
    %v531 = vpop.f32.mrb[0].mxu0
    %v532 = vpop.f32.mrb[0].mxu0
    %v533 = vadd.f32 0.0, %v532
    %v534 = vpop.f32.mrb[0].mxu0
    %535 = vmatprep.mubr.bf16.mxu0 0
    %536 = vmatmul.mubr.bf16.gmra.mrb[0].mxu0 %v107
    %v537 = vpop.f32.mrb[0].mxu0
    %v538 = vadd.f32 0.0, %v537
    %v539 = vpop.f32.mrb[0].mxu0
    %v540 = vpop.f32.mrb[0].mxu0
    %v541 = vadd.f32 0.0, %v540
    %v542 = vpop.f32.mrb[0].mxu0
    %543 = vmatprep.mubr.bf16.mxu0 0
    %544 = vmatmul.mubr.bf16.gmra.mrb[0].mxu0 %v108
    %v545 = vpop.f32.mrb[0].mxu0
    %v546 = vadd.f32 0.0, %v545
    %v547 = vpop.f32.mrb[0].mxu0
    %v548 = vpop.f32.mrb[0].mxu0
    %v549 = vadd.f32 0.0, %v548
    %v550 = vpop.f32.mrb[0].mxu0
    %551 = vmatprep.mubr.bf16.mxu0 0
    %552 = vmatmul.mubr.bf16.gmra.mrb[0].mxu0 %v109
    %v553 = vpop.f32.mrb[0].mxu0
    %v554 = vadd.f32 0.0, %v553
    %v555 = vpop.f32.mrb[0].mxu0
    %v556 = vpop.f32.mrb[0].mxu0
    %v557 = vadd.f32 0.0, %v556
    %v558 = vpop.f32.mrb[0].mxu0
    %559 = vdwg.mxu0
    %v560 = vpack.c.bf16 %v501, %v498
    %v561 = vpack.c.bf16 %v509, %v506
    %v562 = vpack.c.bf16 %v517, %v514
    %v563 = vpack.c.bf16 %v525, %v522
    %v564 = vpack.c.bf16 %v533, %v530
    %v565 = vpack.c.bf16 %v541, %v538
    %v566 = vpack.c.bf16 %v549, %v546
    %v567 = vpack.c.bf16 %v557, %v554
    %v568 = vld [vmem:[%s4] sm:$0xf]
    %v569 = vld [vmem:[%s4 + $0x4] sm:$0xf]
    %v570 = vld [vmem:[%s4 + $0x8] sm:$0xf]
    %v571 = vld [vmem:[%s4 + $0xc] sm:$0xf]
    %v572 = vld [vmem:[%s4 + $0x10] sm:$0xf]
    %v573 = vld [vmem:[%s4 + $0x14] sm:$0xf]
    %v574 = vld [vmem:[%s4 + $0x18] sm:$0xf]
    %v575 = vld [vmem:[%s4 + $0x1c] sm:$0xf]
    %v576 = vld [vmem:[%s4 + $0x20] sm:$0xf]
    %v577 = vld [vmem:[%s4 + $0x24] sm:$0xf]
    %v578 = vld [vmem:[%s4 + $0x28] sm:$0xf]
    %v579 = vld [vmem:[%s4 + $0x2c] sm:$0xf]
    %v580 = vld [vmem:[%s4 + $0x30] sm:$0xf]
    %v581 = vld [vmem:[%s4 + $0x34] sm:$0xf]
    %v582 = vld [vmem:[%s4 + $0x38] sm:$0xf]
    %v583 = vld [vmem:[%s4 + $0x3c] sm:$0xf]
    %v584 = vld [vmem:[%s5] sm:$0x1]
    %v586 = vlaneseq
    %v587 = vshrl.u32 %v586, 7
    %v588 = vsub.s32 0, %v587
    %v589 = vrot.slane %v584, %v588
    %v607 = vunpack.c.l.b16 %v568
    %v608 = vunpack.c.l.b16 %v569
    %v609 = vunpack.c.l.b16 %v570
    %v610 = vunpack.c.l.b16 %v571
    %v611 = vunpack.c.l.b16 %v572
    %v612 = vunpack.c.l.b16 %v573
    %v613 = vunpack.c.l.b16 %v574
    %v614 = vunpack.c.l.b16 %v575
    %v615 = vunpack.c.l.b16 %v576
    %v616 = vunpack.c.l.b16 %v577
    %v617 = vunpack.c.l.b16 %v578
    %v618 = vunpack.c.l.b16 %v579
    %v619 = vunpack.c.l.b16 %v580
    %v620 = vunpack.c.l.b16 %v581
    %v621 = vunpack.c.l.b16 %v582
    %v622 = vunpack.c.l.b16 %v583
    %v623 = vpack.c.b16 %v608, %v607
    %v624 = vpack.c.b16 %v610, %v609
    %v625 = vpack.c.b16 %v612, %v611
    %v626 = vpack.c.b16 %v614, %v613
    %v627 = vpack.c.b16 %v616, %v615
    %v628 = vpack.c.b16 %v618, %v617
    %v629 = vpack.c.b16 %v620, %v619
    %v630 = vpack.c.b16 %v622, %v621
    %639 = vmatprep.subr.bf16.mxu0 0
    %640 = vmatpush1.bf16.msra.mxu0 %v623
    %641 = vmatprep.subr.bf16.mxu0 0
    %642 = vmatpush1.bf16.msra.mxu0 %v624
    %643 = vmatprep.subr.bf16.mxu0 0
    %644 = vmatpush1.bf16.msra.mxu0 %v625
    %645 = vmatprep.subr.bf16.mxu0 0
    %646 = vmatpush1.bf16.msra.mxu0 %v626
    %647 = vmatprep.subr.bf16.mxu0 0
    %648 = vmatpush1.bf16.msra.mxu0 %v627
    %649 = vmatprep.subr.bf16.mxu0 0
    %650 = vmatpush1.bf16.msra.mxu0 %v628
    %651 = vmatprep.subr.bf16.mxu0 0
    %652 = vmatpush1.bf16.msra.mxu0 %v629
    %653 = vmatprep.subr.bf16.mxu0 0
    %654 = vmatpush1.bf16.msra.mxu0 %v630
    %655 = vmatprep.subr.bf16.mxu0 0
    %656 = vmatpush1.bf16.msra.mxu0 0
    %657 = vmatprep.subr.bf16.mxu0 0
    %658 = vmatpush1.bf16.msra.mxu0 0
    %659 = vmatprep.subr.bf16.mxu0 0
    %660 = vmatpush1.bf16.msra.mxu0 0
    %661 = vmatprep.subr.bf16.mxu0 0
    %662 = vmatpush1.bf16.msra.mxu0 0
    %663 = vmatprep.subr.bf16.mxu0 0
    %664 = vmatpush1.bf16.msra.mxu0 0
    %665 = vmatprep.subr.bf16.mxu0 0
    %666 = vmatpush1.bf16.msra.mxu0 0
    %667 = vmatprep.subr.bf16.mxu0 0
    %668 = vmatpush1.bf16.msra.mxu0 0
    %669 = vmatprep.subr.bf16.mxu0 0
    %670 = vmatpush1.bf16.msra.mxu0 0
    %671 = vmatprep.mubr.bf16.mxu0 0
    %672 = vmatmul.mubr.bf16.gmra.mrb[0].mxu0 %v560
    %v673 = vpop.f32.mrb[0].mxu0
    %v674 = vadd.f32 %v589, %v673
    %v675 = vpop.f32.mrb[0].mxu0
    %v676 = vpop.f32.mrb[0].mxu0
    %v677 = vadd.f32 %v589, %v676
    %v678 = vpop.f32.mrb[0].mxu0
    %679 = vmatprep.mubr.bf16.mxu0 0
    %680 = vmatmul.mubr.bf16.gmra.mrb[0].mxu0 %v561
    %v681 = vpop.f32.mrb[0].mxu0
    %v682 = vadd.f32 %v589, %v681
    %v683 = vpop.f32.mrb[0].mxu0
    %v684 = vpop.f32.mrb[0].mxu0
    %v685 = vadd.f32 %v589, %v684
    %v686 = vpop.f32.mrb[0].mxu0
    %687 = vmatprep.mubr.bf16.mxu0 0
    %688 = vmatmul.mubr.bf16.gmra.mrb[0].mxu0 %v562
    %v689 = vpop.f32.mrb[0].mxu0
    %v690 = vadd.f32 %v589, %v689
    %v691 = vpop.f32.mrb[0].mxu0
    %v692 = vpop.f32.mrb[0].mxu0
    %v693 = vadd.f32 %v589, %v692
    %v694 = vpop.f32.mrb[0].mxu0
    %695 = vmatprep.mubr.bf16.mxu0 0
    %696 = vmatmul.mubr.bf16.gmra.mrb[0].mxu0 %v563
    %v697 = vpop.f32.mrb[0].mxu0
    %v698 = vadd.f32 %v589, %v697
    %v699 = vpop.f32.mrb[0].mxu0
    %v700 = vpop.f32.mrb[0].mxu0
    %v701 = vadd.f32 %v589, %v700
    %v702 = vpop.f32.mrb[0].mxu0
    %703 = vmatprep.mubr.bf16.mxu0 0
    %704 = vmatmul.mubr.bf16.gmra.mrb[0].mxu0 %v564
    %v705 = vpop.f32.mrb[0].mxu0
    %v706 = vadd.f32 %v589, %v705
    %v707 = vpop.f32.mrb[0].mxu0
    %v708 = vpop.f32.mrb[0].mxu0
    %v709 = vadd.f32 %v589, %v708
    %v710 = vpop.f32.mrb[0].mxu0
    %711 = vmatprep.mubr.bf16.mxu0 0
    %712 = vmatmul.mubr.bf16.gmra.mrb[0].mxu0 %v565
    %v713 = vpop.f32.mrb[0].mxu0
    %v714 = vadd.f32 %v589, %v713
    %v715 = vpop.f32.mrb[0].mxu0
    %v716 = vpop.f32.mrb[0].mxu0
    %v717 = vadd.f32 %v589, %v716
    %v718 = vpop.f32.mrb[0].mxu0
    %719 = vmatprep.mubr.bf16.mxu0 0
    %720 = vmatmul.mubr.bf16.gmra.mrb[0].mxu0 %v566
    %v721 = vpop.f32.mrb[0].mxu0
    %v722 = vadd.f32 %v589, %v721
    %v723 = vpop.f32.mrb[0].mxu0
    %v724 = vpop.f32.mrb[0].mxu0
    %v725 = vadd.f32 %v589, %v724
    %v726 = vpop.f32.mrb[0].mxu0
    %727 = vmatprep.mubr.bf16.mxu0 0
    %728 = vmatmul.mubr.bf16.gmra.mrb[0].mxu0 %v567
    %v729 = vpop.f32.mrb[0].mxu0
    %v730 = vadd.f32 %v589, %v729
    %v731 = vpop.f32.mrb[0].mxu0
    %v732 = vpop.f32.mrb[0].mxu0
    %v733 = vadd.f32 %v589, %v732
    %v734 = vpop.f32.mrb[0].mxu0
    %735 = vdwg.mxu0
    %736 = vst [vmem:[%s6] sm:$0xff] %v674
    %737 = vst [vmem:[%s6 + $0x8] sm:$0xff] %v677
    %738 = vst [vmem:[%s6 + $0x10] sm:$0xff] %v682
    %739 = vst [vmem:[%s6 + $0x18] sm:$0xff] %v685
    %740 = vst [vmem:[%s6 + $0x20] sm:$0xff] %v690
    %741 = vst [vmem:[%s6 + $0x28] sm:$0xff] %v693
    %742 = vst [vmem:[%s6 + $0x30] sm:$0xff] %v698
    %743 = vst [vmem:[%s6 + $0x38] sm:$0xff] %v701
    %744 = vst [vmem:[%s6 + $0x40] sm:$0xff] %v706
    %745 = vst [vmem:[%s6 + $0x48] sm:$0xff] %v709
    %746 = vst [vmem:[%s6 + $0x50] sm:$0xff] %v714
    %747 = vst [vmem:[%s6 + $0x58] sm:$0xff] %v717
    %748 = vst [vmem:[%s6 + $0x60] sm:$0xff] %v722
    %749 = vst [vmem:[%s6 + $0x68] sm:$0xff] %v725
    %750 = vst [vmem:[%s6 + $0x70] sm:$0xff] %v730
    %751 = vst [vmem:[%s6 + $0x78] sm:$0xff] %v733
    // Predicated region
    $region30: #{forward.1} parent=1 // pred_check
      _
    $region31: #{forward.1} parent=1 // pred_check_branch
      %753 = sbr.rel (0) target = $region33
    $region32: #{forward.1} parent=1 // pred_region
      _
    $region33: #{forward.1} parent=1 // pred_fallthru
      _
    // Predicated region
    $region34: #{forward.1} parent=1 // pred_check
      _
    $region35: #{forward.1} parent=1 // pred_check_branch
      %755 = sbr.rel (0) target = $region37
    $region36: #{forward.1} parent=1 // pred_region
      _
    $region37: #{forward.1} parent=1 // pred_fallthru
      _
    %756 = vsyncpa [#allocation3], 1

</llo_original>
